<compile_context>
chip_gen: v6e
topology: v6e:2x2x1
jax: 0.10.0
libtpu: 0.0.40
codegen_flags: <defaults>
</compile_context>

<pallas_src>
import functools

import numpy as np
import jax
import jax.numpy as jnp
from jax import lax
from jax.experimental import pallas as pl
from jax.experimental.pallas import tpu as pltpu


# ----------------------------------------------------------------------------- pooling
def _pool_tile(x, xp_ref, *, pool_type, kernel_size, stride, padding, L, L_out,
               use_roll):
    """Pool one (n_blk, c_blk, L) f32 tile -> (n_blk, c_blk, L_out) f32.

    use_roll=True  : stride==1 and lane-aligned L -- masked pltpu.roll taps (XLU);
                     masks are applied only for taps that can reach padding.
    use_roll=False : general stride -- build a padded tile in VMEM scratch (xp_ref,
                     only pad regions filled) and take K strided lane slices.
    Padding never contributes: zeros are excluded from the avg divisor
    (count_include_pad=False) and -inf never wins the max.
    """
    K = kernel_size
    fill = 0.0 if pool_type == "avg" else -jnp.inf

    if use_roll:
        lane_cache = [None]

        def _lane():
            if lane_cache[0] is None:
                lane_cache[0] = lax.broadcasted_iota(jnp.int32, (1, 1, L), 2)
            return lane_cache[0]

        acc = None
        for k in range(K):
            off = k - padding  # input index = output index + off  (stride == 1)
            shifted = x if off == 0 else pltpu.roll(x, shift=(-off) % L, axis=2)
            # Only lanes [0, L_out) survive the final slice, so a tap needs masking
            # only if it can actually reach out-of-range input there.
            need_lo = off < 0             # can read left padding
            need_hi = off > L - L_out     # can read right padding (given L_out <= L)
            if need_lo and need_hi:
                valid = jnp.logical_and(_lane() + off >= 0, _lane() + off < L)
                tap = jnp.where(valid, shifted, fill)
            elif need_lo:
                tap = jnp.where(_lane() + off >= 0, shifted, fill)
            elif need_hi:
                tap = jnp.where(_lane() + off < L, shifted, fill)
            else:
                tap = shifted
            if acc is None:
                acc = tap
            elif pool_type == "avg":
                acc = acc + tap
            else:
                acc = jnp.maximum(acc, tap)
        pooled = lax.slice_in_dim(acc, 0, L_out, axis=2)
    else:
        span = stride * (L_out - 1) + 1
        pad_len = xp_ref.shape[-1]
        # Fill only the (small) pad regions, then drop x in place: avoids a full-tile
        # VMEM store (vst is a 1-slot/cycle resource).
        if padding > 0:
            xp_ref[:, :, pl.ds(0, padding)] = jnp.full(
                xp_ref.shape[:2] + (padding,), fill, jnp.float32)
        right = pad_len - (padding + L)
        if right > 0:
            xp_ref[:, :, pl.ds(padding + L, right)] = jnp.full(
                xp_ref.shape[:2] + (right,), fill, jnp.float32)
        xp_ref[:, :, pl.ds(padding, L)] = x
        xp = xp_ref[...]
        pooled = lax.slice_in_dim(xp, 0, span, stride=stride, axis=2)
        for k in range(1, K):
            tap = lax.slice_in_dim(xp, k, k + span, stride=stride, axis=2)
            if pool_type == "avg":
                pooled = pooled + tap
            else:
                pooled = jnp.maximum(pooled, tap)

    if pool_type == "avg":
        # Per-window valid-element count (count_include_pad=False), computed in-kernel.
        j = lax.broadcasted_iota(jnp.int32, (1, 1, L_out), 2)
        start = j * stride - padding
        cnt = jnp.minimum(start + K, L) - jnp.maximum(start, 0)
        pooled = pooled * (1.0 / cnt.astype(jnp.float32))
    return pooled


# ----------------------------------------------------------------------- pass-1 kernel
def _pool_stats_kernel(x_ref, sum_ref, sumsq_ref, *scratch, pool_type, kernel_size,
                       stride, padding, L, L_out, use_roll):
    xp_ref = scratch[0] if scratch else None
    x = x_ref[...].astype(jnp.float32)          # in-register upcast (supports bf16 x)
    pooled = _pool_tile(x, xp_ref, pool_type=pool_type, kernel_size=kernel_size,
                        stride=stride, padding=padding, L=L, L_out=L_out,
                        use_roll=use_roll)

    @pl.when(pl.program_id(1) == 0)             # first batch-block of this channel block
    def _init():
        sum_ref[...] = jnp.zeros_like(sum_ref)
        sumsq_ref[...] = jnp.zeros_like(sumsq_ref)

    sum_ref[...] += jnp.sum(pooled, axis=(0, 2), keepdims=True)[0]            # (c_blk,1)
    sumsq_ref[...] += jnp.sum(pooled * pooled, axis=(0, 2), keepdims=True)[0]


# ----------------------------------------------------------------------- pass-2 kernel
def _pool_norm_kernel(x_ref, scale_ref, shift_ref, o_ref, *scratch, pool_type,
                      kernel_size, stride, padding, L, L_out, use_roll):
    xp_ref = scratch[0] if scratch else None
    x = x_ref[...].astype(jnp.float32)
    pooled = _pool_tile(x, xp_ref, pool_type=pool_type, kernel_size=kernel_size,
                        stride=stride, padding=padding, L=L, L_out=L_out,
                        use_roll=use_roll)
    # Fused BN affine: y = pooled * scale + shift   (scale/shift blocks are (1,c_blk,1)).
    o_ref[...] = (pooled * scale_ref[...] + shift_ref[...]).astype(o_ref.dtype)


# ----------------------------------------------------------------------------- wrapper
def _choose_blocks(N, C, L, itemsize, n_blk, c_blk, target_bytes=2 << 20):
    if c_blk is None:
        c_blk = C                                  # full-C block (legal for any C)
        for cand in (64, 32, 16, 8):               # prefer a multiple-of-8 divisor
            if C % cand == 0:
                c_blk = cand
                break
    if n_blk is None:
        n_blk = 1
        for cand in (16, 8, 4, 2):                 # keep the x tile <= ~2 MiB
            if N % cand == 0 and cand * c_blk * L * itemsize <= target_bytes:
                n_blk = cand
                break
    assert N % n_blk == 0 and C % c_blk == 0
    assert c_blk == C or c_blk % 8 == 0
    return n_blk, c_blk


def pool_bn(x, gamma, beta, *, pool_type, kernel_size, stride, padding,
            eps=1e-5, n_blk=None, c_blk=None):
    """Fused 1D pooling + BatchNorm1d (training-mode batch stats).  x: (N, C, L)."""
    pool_type = pool_type.lower()
    if pool_type not in ("avg", "max"):
        raise ValueError(pool_type)
    N, C, L = x.shape
    L_out = (L + 2 * padding - kernel_size) // stride + 1
    assert L_out >= 1
    itemsize = x.dtype.itemsize
    n_blk, c_blk = _choose_blocks(N, C, L, itemsize, n_blk, c_blk)
    grid = (C // c_blk, N // n_blk)

    # stride==1 with lane-aligned L: masked-roll taps (XLU); otherwise padded scratch.
    use_roll = (stride == 1) and (L % 128 == 0) and (L_out <= L)
    scratch_shapes = []
    if not use_roll:
        span = stride * (L_out - 1) + 1
        pad_len = max(span + kernel_size - 1, L + padding)
        scratch_shapes = [pltpu.VMEM((n_blk, c_blk, pad_len), jnp.float32)]

    kw = dict(pool_type=pool_type, kernel_size=kernel_size, stride=stride,
              padding=padding, L=L, L_out=L_out, use_roll=use_roll)
    x_spec = pl.BlockSpec((n_blk, c_blk, L), lambda ci, ni: (ni, ci, 0))
    vmem_limit = 32 * 1024 * 1024      # <=2 MiB tiles x double-buffering fits everywhere
    x_bytes = N * C * L * itemsize
    out_bytes = N * C * L_out * itemsize

    # ---- pass 1: per-channel pooled sum / sum-of-squares ------------------------------
    sums, sumsqs = pl.pallas_call(
        functools.partial(_pool_stats_kernel, **kw),
        out_shape=(jax.ShapeDtypeStruct((C, 1), jnp.float32),
                   jax.ShapeDtypeStruct((C, 1), jnp.float32)),
        grid=grid,
        in_specs=[x_spec],
        out_specs=(pl.BlockSpec((c_blk, 1), lambda ci, ni: (ci, 0)),
                   pl.BlockSpec((c_blk, 1), lambda ci, ni: (ci, 0))),
        scratch_shapes=scratch_shapes,
        compiler_params=pltpu.CompilerParams(
            dimension_semantics=("parallel", "arbitrary"),
            vmem_limit_bytes=vmem_limit),
        cost_estimate=pl.CostEstimate(
            flops=N * C * L_out * (kernel_size + 3),
            transcendentals=0,
            bytes_accessed=x_bytes + 2 * C * 4),
    )(x)

    # ---- per-channel BN constants (tiny (C,) math in plain XLA) -----------------------
    count = float(N * L_out)
    mean = sums[:, 0] / count
    var = jnp.maximum(sumsqs[:, 0] / count - mean * mean, 0.0)  # biased (training-mode)
    # TODO(synk): for very large N*L_out, accumulate around a per-tile offset (Welford
    # merge) to avoid f32 cancellation in E[x^2] - mean^2.
    inv_std = lax.rsqrt(var + eps)
    g = jnp.ones((C,), jnp.float32) if gamma is None else gamma.astype(jnp.float32)
    b = jnp.zeros((C,), jnp.float32) if beta is None else beta.astype(jnp.float32)
    scale = (g * inv_std).reshape(1, C, 1)
    shift = (b - mean * g * inv_std).reshape(1, C, 1)

    # ---- pass 2: recompute pooling per tile, apply fused affine -----------------------
    out = pl.pallas_call(
        functools.partial(_pool_norm_kernel, **kw),
        out_shape=jax.ShapeDtypeStruct((N, C, L_out), x.dtype),
        grid=grid,
        in_specs=[x_spec,
                  pl.BlockSpec((1, c_blk, 1), lambda ci, ni: (0, ci, 0)),
                  pl.BlockSpec((1, c_blk, 1), lambda ci, ni: (0, ci, 0))],
        out_specs=pl.BlockSpec((n_blk, c_blk, L_out), lambda ci, ni: (ni, ci, 0)),
        scratch_shapes=scratch_shapes,
        compiler_params=pltpu.CompilerParams(
            dimension_semantics=("parallel", "parallel"),
            vmem_limit_bytes=vmem_limit),
        cost_estimate=pl.CostEstimate(
            flops=N * C * L_out * (kernel_size + 2),
            transcendentals=0,
            bytes_accessed=x_bytes + out_bytes + 2 * C * 4),
    )(x, scale, shift)
    return out


# --------------------------------------------------------------------------- reference
def _ref_pool_bn(x, gamma, beta, pool_type, kernel_size, stride, padding, eps=1e-5):
    """Pure-JAX reference mirroring PyTorch semantics."""
    N, C, L = x.shape
    L_out = (L + 2 * padding - kernel_size) // stride + 1
    cols = []
    for j in range(L_out):
        s = j * stride - padding
        lo, hi = max(s, 0), min(s + kernel_size, L)
        w = x[:, :, lo:hi]
        cols.append(jnp.mean(w, axis=2) if pool_type == "avg" else jnp.max(w, axis=2))
    p = jnp.stack(cols, axis=2)
    mean = jnp.mean(p, axis=(0, 2), keepdims=True)
    var = jnp.mean((p - mean) ** 2, axis=(0, 2), keepdims=True)
    return (p - mean) * lax.rsqrt(var + eps) * gamma.reshape(1, C, 1) + beta.reshape(1, C, 1)


if __name__ == "__main__":
    key = jax.random.PRNGKey(0)
    N, C, L = 4, 16, 128
    kernel_size = 3

    x = jax.random.normal(key, (N, C, L), dtype=jnp.float32)
    gamma = 1.0 + 0.1 * jnp.arange(C, dtype=jnp.float32)   # BatchNorm1d(C) affine params
    beta = 0.01 * jnp.arange(C, dtype=jnp.float32)

    fn = jax.jit(pool_bn, static_argnames=("pool_type", "kernel_size", "stride",
                                           "padding", "eps", "n_blk", "c_blk"))

    # stride=1 exercises the masked-roll path (lane-dense L_out=128);
    # stride=2 exercises the padded-VMEM-scratch path.  Block overrides force a
    # 2x2 grid so the multi-step stats accumulation is covered.
    configs = [("avg", 1, 1), ("max", 1, 1), ("avg", 2, 1), ("max", 2, 1)]
    for pool_type, stride, padding in configs:
        out = fn(x, gamma, beta, pool_type=pool_type, kernel_size=kernel_size,
                 stride=stride, padding=padding, n_blk=2, c_blk=8)
        jax.block_until_ready(out)
        ref = _ref_pool_bn(x, gamma, beta, pool_type, kernel_size, stride, padding)
        np.testing.assert_allclose(np.asarray(out), np.asarray(ref),
                                   rtol=1e-4, atol=1e-4)

    print("KERNEL_OK")
</pallas_src>

<mosaic_0001>
module attributes {stable_mosaic.version = 11 : i64} {
  func.func @_pool_stats_kernel(%arg0: i32, %arg1: i32, %arg2: memref<2x8x128xf32, #tpu.memory_space<vmem>>, %arg3: memref<8x1xf32, #tpu.memory_space<vmem>>, %arg4: memref<8x1xf32, #tpu.memory_space<vmem>>) attributes {dimension_semantics = [#tpu.dimension_semantics<parallel>, #tpu.dimension_semantics<arbitrary>], iteration_bounds = array<i64: 2, 2>, scalar_prefetch = 0 : i64, scratch_operands = 0 : i64, tpu.core_type = #tpu.core_type<tc>, window_params = [{transform_indices = @transform_0, window_bounds = array<i64: 2, 8, 128>}, {transform_indices = @transform_1, window_bounds = array<i64: 8, 1>}, {transform_indices = @transform_2, window_bounds = array<i64: 8, 1>}]} {
    %c0 = arith.constant 0 : index
    %c0_0 = arith.constant 0 : index
    %c0_1 = arith.constant 0 : index
    %0 = vector.load %arg2[%c0, %c0_0, %c0_1] : memref<2x8x128xf32, #tpu.memory_space<vmem>>, vector<2x8x128xf32>
    %c1_i32 = arith.constant 1 : i32
    %1 = tpu.dynamic_rotate %0 by %c1_i32 dim 2 : vector<2x8x128xf32>, i32 -> vector<2x8x128xf32>
    %2 = tpu.iota {dimensions = array<i32: 2>} : vector<1x1x128xi32>
    %c-1_i32 = arith.constant -1 : i32
    %3 = vector.broadcast %c-1_i32 : i32 to vector<1x1x128xi32>
    %4 = arith.addi %2, %3 : vector<1x1x128xi32>
    %c0_i32 = arith.constant 0 : i32
    %5 = vector.broadcast %c0_i32 : i32 to vector<1x1x128xi32>
    %6 = arith.cmpi sge, %4, %5 : vector<1x1x128xi32>
    %cst = arith.constant 0.000000e+00 : f32
    %7 = vector.shape_cast %6 : vector<1x1x128xi1> to vector<1x1x128xi1>
    %8 = vector.broadcast %7 : vector<1x1x128xi1> to vector<2x8x128xi1>
    %9 = vector.broadcast %cst : f32 to vector<2x8x128xf32>
    %10 = arith.select %8, %1, %9 : vector<2x8x128xi1>, vector<2x8x128xf32>
    %11 = arith.addf %10, %0 : vector<2x8x128xf32>
    %c127_i32 = arith.constant 127 : i32
    %12 = tpu.dynamic_rotate %0 by %c127_i32 dim 2 : vector<2x8x128xf32>, i32 -> vector<2x8x128xf32>
    %c1_i32_2 = arith.constant 1 : i32
    %13 = vector.broadcast %c1_i32_2 : i32 to vector<1x1x128xi32>
    %14 = arith.addi %2, %13 : vector<1x1x128xi32>
    %c128_i32 = arith.constant 128 : i32
    %15 = vector.broadcast %c128_i32 : i32 to vector<1x1x128xi32>
    %16 = arith.cmpi slt, %14, %15 : vector<1x1x128xi32>
    %cst_3 = arith.constant 0.000000e+00 : f32
    %17 = vector.shape_cast %16 : vector<1x1x128xi1> to vector<1x1x128xi1>
    %18 = vector.broadcast %17 : vector<1x1x128xi1> to vector<2x8x128xi1>
    %19 = vector.broadcast %cst_3 : f32 to vector<2x8x128xf32>
    %20 = arith.select %18, %12, %19 : vector<2x8x128xi1>, vector<2x8x128xf32>
    %21 = arith.addf %11, %20 : vector<2x8x128xf32>
    %22 = vector.extract_strided_slice %21 {offsets = [0, 0, 0], sizes = [2, 8, 128], strides = [1, 1, 1]} : vector<2x8x128xf32> to vector<2x8x128xf32>
    %23 = tpu.iota {dimensions = array<i32: 2>} : vector<1x1x128xi32>
    %c1_i32_4 = arith.constant 1 : i32
    %24 = vector.broadcast %c1_i32_4 : i32 to vector<1x1x128xi32>
    %25 = arith.muli %23, %24 : vector<1x1x128xi32>
    %c1_i32_5 = arith.constant 1 : i32
    %26 = vector.broadcast %c1_i32_5 : i32 to vector<1x1x128xi32>
    %27 = arith.subi %25, %26 : vector<1x1x128xi32>
    %c3_i32 = arith.constant 3 : i32
    %28 = vector.broadcast %c3_i32 : i32 to vector<1x1x128xi32>
    %29 = arith.addi %27, %28 : vector<1x1x128xi32>
    %c128_i32_6 = arith.constant 128 : i32
    %30 = vector.broadcast %c128_i32_6 : i32 to vector<1x1x128xi32>
    %31 = arith.minsi %29, %30 : vector<1x1x128xi32>
    %c0_i32_7 = arith.constant 0 : i32
    %32 = vector.broadcast %c0_i32_7 : i32 to vector<1x1x128xi32>
    %33 = arith.maxsi %27, %32 : vector<1x1x128xi32>
    %34 = arith.subi %31, %33 : vector<1x1x128xi32>
    %35 = arith.sitofp %34 : vector<1x1x128xi32> to vector<1x1x128xf32>
    %cst_8 = arith.constant 1.000000e+00 : f32
    %36 = vector.broadcast %cst_8 : f32 to vector<1x1x128xf32>
    %37 = arith.divf %36, %35 : vector<1x1x128xf32>
    %38 = vector.broadcast %37 : vector<1x1x128xf32> to vector<2x8x128xf32>
    %39 = arith.mulf %22, %38 : vector<2x8x128xf32>
    %c0_i32_9 = arith.constant 0 : i32
    %40 = arith.cmpi eq, %arg1, %c0_i32_9 : i32
    %41 = arith.extui %40 : i1 to i32
    %c0_i32_10 = arith.constant 0 : i32
    %42 = arith.cmpi ne, %41, %c0_i32_10 : i32
    scf.if %42 {
      %cst_21 = arith.constant 0.000000e+00 : f32
      %56 = vector.broadcast %cst_21 : f32 to vector<8x1xf32>
      %c0_22 = arith.constant 0 : index
      %c0_23 = arith.constant 0 : index
      %57 = vector.load %arg3[%c0_22, %c0_23] : memref<8x1xf32, #tpu.memory_space<vmem>>, vector<8x1xf32>
      tpu.vector_store %arg3[%c0_22, %c0_23], %56 {strides = array<i32>} : memref<8x1xf32, #tpu.memory_space<vmem>>, vector<8x1xf32>,
      %cst_24 = arith.constant 0.000000e+00 : f32
      %58 = vector.broadcast %cst_24 : f32 to vector<8x1xf32>
      %c0_25 = arith.constant 0 : index
      %c0_26 = arith.constant 0 : index
      %59 = vector.load %arg4[%c0_25, %c0_26] : memref<8x1xf32, #tpu.memory_space<vmem>>, vector<8x1xf32>
      tpu.vector_store %arg4[%c0_25, %c0_26], %58 {strides = array<i32>} : memref<8x1xf32, #tpu.memory_space<vmem>>, vector<8x1xf32>,
    } else {
    }
    %c0_11 = arith.constant 0 : index
    %c0_12 = arith.constant 0 : index
    %43 = vector.load %arg3[%c0_11, %c0_12] : memref<8x1xf32, #tpu.memory_space<vmem>>, vector<8x1xf32>
    %cst_13 = arith.constant dense<0.000000e+00> : vector<8xf32>
    %44 = vector.multi_reduction <add>, %39, %cst_13 [0, 2] : vector<2x8x128xf32> to vector<8xf32>
    %45 = vector.shape_cast %44 : vector<8xf32> to vector<1x8x1xf32>
    %46 = vector.shape_cast %45 : vector<1x8x1xf32> to vector<8x1xf32>
    %47 = arith.addf %43, %46 : vector<8x1xf32>
    %c0_14 = arith.constant 0 : index
    %c0_15 = arith.constant 0 : index
    %48 = vector.load %arg3[%c0_14, %c0_15] : memref<8x1xf32, #tpu.memory_space<vmem>>, vector<8x1xf32>
    tpu.vector_store %arg3[%c0_14, %c0_15], %47 {strides = array<i32>} : memref<8x1xf32, #tpu.memory_space<vmem>>, vector<8x1xf32>,
    %c0_16 = arith.constant 0 : index
    %c0_17 = arith.constant 0 : index
    %49 = vector.load %arg4[%c0_16, %c0_17] : memref<8x1xf32, #tpu.memory_space<vmem>>, vector<8x1xf32>
    %50 = arith.mulf %39, %39 : vector<2x8x128xf32>
    %cst_18 = arith.constant dense<0.000000e+00> : vector<8xf32>
    %51 = vector.multi_reduction <add>, %50, %cst_18 [0, 2] : vector<2x8x128xf32> to vector<8xf32>
    %52 = vector.shape_cast %51 : vector<8xf32> to vector<1x8x1xf32>
    %53 = vector.shape_cast %52 : vector<1x8x1xf32> to vector<8x1xf32>
    %54 = arith.addf %49, %53 : vector<8x1xf32>
    %c0_19 = arith.constant 0 : index
    %c0_20 = arith.constant 0 : index
    %55 = vector.load %arg4[%c0_19, %c0_20] : memref<8x1xf32, #tpu.memory_space<vmem>>, vector<8x1xf32>
    tpu.vector_store %arg4[%c0_19, %c0_20], %54 {strides = array<i32>} : memref<8x1xf32, #tpu.memory_space<vmem>>, vector<8x1xf32>,
    return
  }
  func.func @transform_0(%arg0: i32, %arg1: i32) -> (i32, i32, i32) {
    %c0_i32 = arith.constant 0 : i32
    %c0_i32_0 = arith.constant 0 : i32
    return %arg1, %arg0, %c0_i32 : i32, i32, i32
  }
  func.func @transform_1(%arg0: i32, %arg1: i32) -> (i32, i32) {
    %c0_i32 = arith.constant 0 : i32
    %c0_i32_0 = arith.constant 0 : i32
    return %arg0, %c0_i32 : i32, i32
  }
  func.func @transform_2(%arg0: i32, %arg1: i32) -> (i32, i32) {
    %c0_i32 = arith.constant 0 : i32
    %c0_i32_0 = arith.constant 0 : i32
    return %arg0, %c0_i32 : i32, i32
  }
}

module attributes {stable_mosaic.version = 11 : i64} {
  func.func @_pool_norm_kernel(%arg0: i32, %arg1: i32, %arg2: memref<2x8x128xf32, #tpu.memory_space<vmem>>, %arg3: memref<1x8x1xf32, #tpu.memory_space<vmem>>, %arg4: memref<1x8x1xf32, #tpu.memory_space<vmem>>, %arg5: memref<2x8x128xf32, #tpu.memory_space<vmem>>) attributes {dimension_semantics = [#tpu.dimension_semantics<parallel>, #tpu.dimension_semantics<parallel>], iteration_bounds = array<i64: 2, 2>, scalar_prefetch = 0 : i64, scratch_operands = 0 : i64, tpu.core_type = #tpu.core_type<tc>, window_params = [{transform_indices = @transform_0, window_bounds = array<i64: 2, 8, 128>}, {transform_indices = @transform_1, window_bounds = array<i64: 1, 8, 1>}, {transform_indices = @transform_2, window_bounds = array<i64: 1, 8, 1>}, {transform_indices = @transform_3, window_bounds = array<i64: 2, 8, 128>}]} {
    %c0 = arith.constant 0 : index
    %c0_0 = arith.constant 0 : index
    %c0_1 = arith.constant 0 : index
    %0 = vector.load %arg2[%c0, %c0_0, %c0_1] : memref<2x8x128xf32, #tpu.memory_space<vmem>>, vector<2x8x128xf32>
    %c1_i32 = arith.constant 1 : i32
    %1 = tpu.dynamic_rotate %0 by %c1_i32 dim 2 : vector<2x8x128xf32>, i32 -> vector<2x8x128xf32>
    %2 = tpu.iota {dimensions = array<i32: 2>} : vector<1x1x128xi32>
    %c-1_i32 = arith.constant -1 : i32
    %3 = vector.broadcast %c-1_i32 : i32 to vector<1x1x128xi32>
    %4 = arith.addi %2, %3 : vector<1x1x128xi32>
    %c0_i32 = arith.constant 0 : i32
    %5 = vector.broadcast %c0_i32 : i32 to vector<1x1x128xi32>
    %6 = arith.cmpi sge, %4, %5 : vector<1x1x128xi32>
    %cst = arith.constant 0.000000e+00 : f32
    %7 = vector.shape_cast %6 : vector<1x1x128xi1> to vector<1x1x128xi1>
    %8 = vector.broadcast %7 : vector<1x1x128xi1> to vector<2x8x128xi1>
    %9 = vector.broadcast %cst : f32 to vector<2x8x128xf32>
    %10 = arith.select %8, %1, %9 : vector<2x8x128xi1>, vector<2x8x128xf32>
    %11 = arith.addf %10, %0 : vector<2x8x128xf32>
    %c127_i32 = arith.constant 127 : i32
    %12 = tpu.dynamic_rotate %0 by %c127_i32 dim 2 : vector<2x8x128xf32>, i32 -> vector<2x8x128xf32>
    %c1_i32_2 = arith.constant 1 : i32
    %13 = vector.broadcast %c1_i32_2 : i32 to vector<1x1x128xi32>
    %14 = arith.addi %2, %13 : vector<1x1x128xi32>
    %c128_i32 = arith.constant 128 : i32
    %15 = vector.broadcast %c128_i32 : i32 to vector<1x1x128xi32>
    %16 = arith.cmpi slt, %14, %15 : vector<1x1x128xi32>
    %cst_3 = arith.constant 0.000000e+00 : f32
    %17 = vector.shape_cast %16 : vector<1x1x128xi1> to vector<1x1x128xi1>
    %18 = vector.broadcast %17 : vector<1x1x128xi1> to vector<2x8x128xi1>
    %19 = vector.broadcast %cst_3 : f32 to vector<2x8x128xf32>
    %20 = arith.select %18, %12, %19 : vector<2x8x128xi1>, vector<2x8x128xf32>
    %21 = arith.addf %11, %20 : vector<2x8x128xf32>
    %22 = vector.extract_strided_slice %21 {offsets = [0, 0, 0], sizes = [2, 8, 128], strides = [1, 1, 1]} : vector<2x8x128xf32> to vector<2x8x128xf32>
    %23 = tpu.iota {dimensions = array<i32: 2>} : vector<1x1x128xi32>
    %c1_i32_4 = arith.constant 1 : i32
    %24 = vector.broadcast %c1_i32_4 : i32 to vector<1x1x128xi32>
    %25 = arith.muli %23, %24 : vector<1x1x128xi32>
    %c1_i32_5 = arith.constant 1 : i32
    %26 = vector.broadcast %c1_i32_5 : i32 to vector<1x1x128xi32>
    %27 = arith.subi %25, %26 : vector<1x1x128xi32>
    %c3_i32 = arith.constant 3 : i32
    %28 = vector.broadcast %c3_i32 : i32 to vector<1x1x128xi32>
    %29 = arith.addi %27, %28 : vector<1x1x128xi32>
    %c128_i32_6 = arith.constant 128 : i32
    %30 = vector.broadcast %c128_i32_6 : i32 to vector<1x1x128xi32>
    %31 = arith.minsi %29, %30 : vector<1x1x128xi32>
    %c0_i32_7 = arith.constant 0 : i32
    %32 = vector.broadcast %c0_i32_7 : i32 to vector<1x1x128xi32>
    %33 = arith.maxsi %27, %32 : vector<1x1x128xi32>
    %34 = arith.subi %31, %33 : vector<1x1x128xi32>
    %35 = arith.sitofp %34 : vector<1x1x128xi32> to vector<1x1x128xf32>
    %cst_8 = arith.constant 1.000000e+00 : f32
    %36 = vector.broadcast %cst_8 : f32 to vector<1x1x128xf32>
    %37 = arith.divf %36, %35 : vector<1x1x128xf32>
    %38 = vector.broadcast %37 : vector<1x1x128xf32> to vector<2x8x128xf32>
    %39 = arith.mulf %22, %38 : vector<2x8x128xf32>
    %c0_9 = arith.constant 0 : index
    %c0_10 = arith.constant 0 : index
    %c0_11 = arith.constant 0 : index
    %40 = vector.load %arg3[%c0_9, %c0_10, %c0_11] : memref<1x8x1xf32, #tpu.memory_space<vmem>>, vector<1x8x1xf32>
    %41 = vector.broadcast %40 : vector<1x8x1xf32> to vector<2x8x128xf32>
    %42 = arith.mulf %39, %41 : vector<2x8x128xf32>
    %c0_12 = arith.constant 0 : index
    %c0_13 = arith.constant 0 : index
    %c0_14 = arith.constant 0 : index
    %43 = vector.load %arg4[%c0_12, %c0_13, %c0_14] : memref<1x8x1xf32, #tpu.memory_space<vmem>>, vector<1x8x1xf32>
    %44 = vector.broadcast %43 : vector<1x8x1xf32> to vector<2x8x128xf32>
    %45 = arith.addf %42, %44 : vector<2x8x128xf32>
    %c0_15 = arith.constant 0 : index
    %c0_16 = arith.constant 0 : index
    %c0_17 = arith.constant 0 : index
    %46 = vector.load %arg5[%c0_15, %c0_16, %c0_17] : memref<2x8x128xf32, #tpu.memory_space<vmem>>, vector<2x8x128xf32>
    tpu.vector_store %arg5[%c0_15, %c0_16, %c0_17], %45 {strides = array<i32>} : memref<2x8x128xf32, #tpu.memory_space<vmem>>, vector<2x8x128xf32>,
    return
  }
  func.func @transform_0(%arg0: i32, %arg1: i32) -> (i32, i32, i32) {
    %c0_i32 = arith.constant 0 : i32
    %c0_i32_0 = arith.constant 0 : i32
    return %arg1, %arg0, %c0_i32 : i32, i32, i32
  }
  func.func @transform_1(%arg0: i32, %arg1: i32) -> (i32, i32, i32) {
    %c0_i32 = arith.constant 0 : i32
    %c0_i32_0 = arith.constant 0 : i32
    %c0_i32_1 = arith.constant 0 : i32
    return %c0_i32, %arg0, %c0_i32_0 : i32, i32, i32
  }
  func.func @transform_2(%arg0: i32, %arg1: i32) -> (i32, i32, i32) {
    %c0_i32 = arith.constant 0 : i32
    %c0_i32_0 = arith.constant 0 : i32
    %c0_i32_1 = arith.constant 0 : i32
    return %c0_i32, %arg0, %c0_i32_0 : i32, i32, i32
  }
  func.func @transform_3(%arg0: i32, %arg1: i32) -> (i32, i32, i32) {
    %c0_i32 = arith.constant 0 : i32
    %c0_i32_0 = arith.constant 0 : i32
    return %arg1, %arg0, %c0_i32 : i32, i32, i32
  }
}

</mosaic_0001>

<llo_original>
// kernel: pool_bn.2
$region0: #{pool_bn.2}
  #allocation0 [shape = 'u32[]', space=smem, size = 0x4, offset = 0x4, fixed_abs, tag = 'smem constant byte address 0x4 - core index']
  #allocation1 [shape = 'u32[144,128]{1,0:T(1,128)}', space=vmem, size = 0x12000, scoped, tag = 'internal scratch']
  %s0 = inlined_call_operand.hbm [shape: f32[4,16,128], index: 0, kind: input, shape index: {}]
  %s1 = inlined_call_operand.vmem [shape: f32[16,1], index: 1, kind: output, shape index: {0}]
  %s2 = inlined_call_operand.vmem [shape: f32[16,1], index: 2, kind: output, shape index: {1}]
  %3 = xla_tuple %s1, %s2
  %s4 = sld [smem:[#allocation0]]
  $region53: #{pool_bn.2} parent=0
    _
  %s6 = ssub.s32 1, %s4
  %s7 = scalar_select 0, %s6, %s4
  $region1: #{pool_bn.2} parent=0
    #allocation2 [shape = 'u8[16384]{0}', space=vmem, size = 0x4000, scoped, tag = 'input window, operand 0']
    #allocation3 [shape = 's32[2]{0}', space=sflag, size = 0x8, scoped, tag = 'scoped memory for pool_bn.2']
    %8 = vsyncpa [#allocation3], 0
    %s9 = scalar_lea.sflag [#allocation3], 1
    %10 = vsyncpa %s9, 0
    loop: start=0, step=1, limit=6
    $region2: #{pool_bn.2} parent=1 // loop_pre_header
      _
    $region3: #{pool_bn.2} parent=1 // loop_header
      %s12 = sphi 0, %s16
      %p13 = scmp.ge.s32.totalorder %s12, 6
      %s19 = sphi 0, %s31
      %s20 = sphi 0, %s27
      %s21 = sphi 0, %s19
      %s22 = sphi 0, %s20
      %s23 = sphi 0, %s21
      %s24 = sphi 0, %s22
      %s36 = sphi 0, %s38
      %s39 = sphi 0, %s36
      %s40 = sphi 0, %s39
      %s56 = sphi 0, %s40
      %s62 = sphi 0, %s64
      %s65 = sphi 0, %s62
      %s66 = sphi 0, %s65
      %s82 = sphi 0, %s66
      %s88 = sphi 0, %s90
      %s91 = sphi 0, %s88
      %s92 = sphi 0, %s91
      %s108 = sphi 0, %s92
    $region4: #{pool_bn.2} parent=1 // loop_header_branch
      %15 = sbr.rel (%p13) target = $region8
    $region5: #{pool_bn.2} parent=1 // loop_body
      %s17 = ssub.s32 %s12, 1
      %s18 = ssub.s32 %s12, 2
      %s25 = sadd.s32 1, %s20
      %p26 = scmp.ge.s32.totalorder %s25, 2
      %s27 = scalar_select %p26, 0, %s25
      %s28 = sadd.s32 1, %s19
      %s29 = scalar_select %p26, %s28, %s19
      %p30 = scmp.ge.s32.totalorder %s29, 2
      %s31 = scalar_select %p30, 0, %s29
      %s32 = ssub.s32 %s20, %s27
      %s33 = ssub.s32 %s19, %s31
      %s34 = sor.u32 %s32, %s33
      %p35 = scmp.eq.s32.totalorder %s34, 0
      %s37 = sadd.s32 %s36, 1
      %s38 = scalar_select %p35, %s36, %s37
      %p41 = pneg %p35
      %p42 = scmp.eq.s32.totalorder %s12, 3
      %p43 = por %p41, %p42
      %p44 = scmp.ne.s32.totalorder %s36, %s39
      %p45 = scmp.eq.s32.totalorder %s12, 0
      %p46 = por %p44, %p45
      %p47 = scmp.ne.s32.totalorder %s36, %s39
      %p48 = scmp.eq.s32.totalorder %s17, 3
      %p49 = por %p47, %p48
      %p50 = scmp.ne.s32.totalorder %s39, %s40
      %p51 = scmp.eq.s32.totalorder %s17, 0
      %p52 = por %p50, %p51
      %p53 = scmp.ne.s32.totalorder %s39, %s40
      %p54 = scmp.eq.s32.totalorder %s18, 3
      %p55 = por %p53, %p54
      %p57 = scmp.ne.s32.totalorder %s40, %s56
      %p58 = scmp.eq.s32.totalorder %s18, 0
      %p59 = por %p57, %p58
      %s60 = ssub.s32 %s19, %s31
      %p61 = scmp.eq.s32.totalorder %s60, 0
      %s63 = sadd.s32 %s62, 1
      %s64 = scalar_select %p61, %s62, %s63
      %p67 = pneg %p61
      %p68 = scmp.eq.s32.totalorder %s12, 3
      %p69 = por %p67, %p68
      %p70 = scmp.ne.s32.totalorder %s62, %s65
      %p71 = scmp.eq.s32.totalorder %s12, 0
      %p72 = por %p70, %p71
      %p73 = scmp.ne.s32.totalorder %s62, %s65
      %p74 = scmp.eq.s32.totalorder %s17, 3
      %p75 = por %p73, %p74
      %p76 = scmp.ne.s32.totalorder %s65, %s66
      %p77 = scmp.eq.s32.totalorder %s17, 0
      %p78 = por %p76, %p77
      %p79 = scmp.ne.s32.totalorder %s65, %s66
      %p80 = scmp.eq.s32.totalorder %s18, 3
      %p81 = por %p79, %p80
      %p83 = scmp.ne.s32.totalorder %s66, %s82
      %p84 = scmp.eq.s32.totalorder %s18, 0
      %p85 = por %p83, %p84
      %s86 = ssub.s32 %s19, %s31
      %p87 = scmp.eq.s32.totalorder %s86, 0
      %s89 = sadd.s32 %s88, 1
      %s90 = scalar_select %p87, %s88, %s89
      %p93 = pneg %p87
      %p94 = scmp.eq.s32.totalorder %s12, 3
      %p95 = por %p93, %p94
      %p96 = scmp.ne.s32.totalorder %s88, %s91
      %p97 = scmp.eq.s32.totalorder %s12, 0
      %p98 = por %p96, %p97
      %p99 = scmp.ne.s32.totalorder %s88, %s91
      %p100 = scmp.eq.s32.totalorder %s17, 3
      %p101 = por %p99, %p100
      %p102 = scmp.ne.s32.totalorder %s91, %s92
      %p103 = scmp.eq.s32.totalorder %s17, 0
      %p104 = por %p102, %p103
      %p105 = scmp.ne.s32.totalorder %s91, %s92
      %p106 = scmp.eq.s32.totalorder %s18, 3
      %p107 = por %p105, %p106
      %p109 = scmp.ne.s32.totalorder %s92, %s108
      %p110 = scmp.eq.s32.totalorder %s18, 0
      %p111 = por %p109, %p110
      %p112 = scmp.le.s32.totalorder 1, %s12
      %p113 = scmp.lt.s32.totalorder %s12, 5
      %p114 = pnand %p112, %p113
      %p115 = pneg %p114
      // Predicated region
      $region9: #{pool_bn.2} parent=5 // pred_check
        _
      $region10: #{pool_bn.2} parent=5 // pred_check_branch
        %117 = sbr.rel (%p114) target = $region12
      $region11: #{pool_bn.2} parent=5 // pred_region
        %s118 = ssub.s32 %s12, 1
      $region12: #{pool_bn.2} parent=5 // pred_fallthru
        _
      %p119 = scmp.lt.s32.totalorder %s12, 4
      // Predicated region
      $region13: #{pool_bn.2} parent=5 // pred_check
        %p120 = pneg %p119
      $region14: #{pool_bn.2} parent=5 // pred_check_branch
        %122 = sbr.rel (%p120) target = $region16
      $region15: #{pool_bn.2} parent=5 // pred_region
        // Predicated region
        $region17: #{pool_bn.2} parent=15 // pred_check
          %p123 = pneg %p46
        $region18: #{pool_bn.2} parent=15 // pred_check_branch
          %125 = sbr.rel (%p123) target = $region20
        $region19: #{pool_bn.2} parent=15 // pred_region
          %s126 = sand.u32 %s36, 1
          %s127 = scalar_lea.sflag [#allocation3], %s126
          %s128 = sand.u32 %s36, 1
          %s129 = smul.addr %s128, 16
          %s130 = scalar_lea.vmem [#allocation2], %s129
          %s131 = smul.u32 2, %s20
          %s133 = ssub.s32 256, 256
          %134 = vsyncadd %s127, %s133
          %s135 = smul.addr %s131, 2
          %s136 = sadd.s32 %s19, %s135
          %s137 = smul.addr %s136, 128
          %s138 = scalar_lea.hbm %s0, %s137
          %s139 = sshll.u32 %s130, 4
          %s140 = int_to_ptr.vmem [resolvable:$true] %s139
          %145 = dma.hbm_to_vmem [thread:$0]  %s138, 256, %s140, %s127, 256, 128, 8
        $region20: #{pool_bn.2} parent=15 // pred_fallthru
          _
      $region16: #{pool_bn.2} parent=5 // pred_fallthru
        _
      %p146 = scmp.le.s32.totalorder 1, %s12
      %p147 = scmp.lt.s32.totalorder %s12, 5
      %p148 = pnand %p146, %p147
      %p149 = pneg %p148
      // Predicated region
      $region21: #{pool_bn.2} parent=5 // pred_check
        _
      $region22: #{pool_bn.2} parent=5 // pred_check_branch
        %151 = sbr.rel (%p148) target = $region24
      $region23: #{pool_bn.2} parent=5 // pred_region
        %s152 = ssub.s32 %s12, 1
        %s153 = sand.u32 %s39, 1
        %s154 = scalar_lea.sflag [#allocation3], %s153
        %s155 = sand.u32 %s39, 1
        %s156 = smul.addr %s155, 16
        %s157 = scalar_lea.vmem [#allocation2], %s156
        // Predicated region
        $region25: #{pool_bn.2} parent=23 // pred_check
          %p158 = pneg %p52
        $region26: #{pool_bn.2} parent=23 // pred_check_branch
          %160 = sbr.rel (%p158) target = $region28
        $region27: #{pool_bn.2} parent=23 // pred_region
          %161 = dma.done %s154, 256
        $region28: #{pool_bn.2} parent=23 // pred_fallthru
          _
        %s162 = sand.u32 %s39, 1
        %s163 = scalar_lea.sflag [#allocation3], %s162
        %s164 = sand.u32 %s39, 1
        %s165 = smul.addr %s164, 16
        %s166 = scalar_lea.vmem [#allocation2], %s165
        %p167 = pneg %p52
        %p168 = pneg %p49
        %p169 = pneg %p78
        %p170 = pneg %p75
        %p171 = scmp.lt.s32.totalorder %s21, 1
        %s172 = scalar_select %p171, %s21, 1
        %s173 = smul.addr %s172, 8
        %s174 = scalar_lea.vmem %s1, %s173
        %p175 = pneg %p104
        %p176 = pneg %p101
        %p177 = scmp.lt.s32.totalorder %s21, 1
        %s178 = scalar_select %p177, %s21, 1
        %s179 = smul.addr %s178, 8
        %s180 = scalar_lea.vmem %s2, %s179
        %s181 = smul.u32 2, %s22
        %p182 = scmp.lt.s32.totalorder %s21, 1
        %s183 = scalar_select %p182, %s21, 1
        %s184 = smul.addr %s183, 8
        %s185 = scalar_lea.vmem %s1, %s184
        %p186 = scmp.lt.s32.totalorder %s21, 1
        %s187 = scalar_select %p186, %s21, 1
        %s188 = smul.addr %s187, 8
        %s189 = scalar_lea.vmem %s2, %s188
        %v190 = vld [vmem:[%s157] sm:$0xff]
        %v191 = vld [vmem:[%s157 + $0x8] sm:$0xff]
        %192 = vrot.lane.b32.xlu0 %v190, 1
        %v193 = vpop.permute.xlu0 %192
        %194 = vrot.lane.b32.xlu0 %v191, 1
        %v195 = vpop.permute.xlu0 %194
        %v196 = vlaneseq
        %v197 = vand.u32 %v196, 127
        %v198 = vadd.s32 %v197, 4294967295
        %vm199 = vcmp.ge.s32.totalorder %v198, 0
        %v200 = vsel %vm199, 1, 0
        %vm201 = vcmp.eq.s32.totalorder %v200, 1
        %v202 = vsel %vm201, %v193, 0.0
        %v203 = vsel %vm201, %v195, 0.0
        %v204 = vadd.f32 %v202, %v190
        %v205 = vadd.f32 %v203, %v191
        %206 = vrot.lane.b32.xlu0 %v190, 127
        %v207 = vpop.permute.xlu0 %206
        %208 = vrot.lane.b32.xlu0 %v191, 127
        %v209 = vpop.permute.xlu0 %208
        %v210 = vadd.s32 %v197, 1
        %vm211 = vcmp.lt.s32.totalorder %v210, 128
        %v212 = vsel %vm211, 1, 0
        %vm213 = vcmp.eq.s32.totalorder %v212, 1
        %v214 = vsel %vm213, %v207, 0.0
        %v215 = vsel %vm213, %v209, 0.0
        %v216 = vadd.f32 %v204, %v214
        %v217 = vadd.f32 %v205, %v215
        %v218 = vsub.s32 %v197, 1
        %v219 = vadd.s32 %v218, 3
        %vm220 = vcmp.lt.s32.totalorder %v219, 128
        %v221 = vsel %vm220, %v219, 128
        %vm222 = vcmp.gt.s32.totalorder %v218, 0
        %v223 = vsel %vm222, %v218, 0
        %v224 = vsub.s32 %v221, %v223
        %v225 = vcvt.s32.f32 %v224
        %v226 = vrcp.pop %v225
        %v227 = vmul.f32 1.0, %v226
        %v228 = vmul.f32 %v216, %v227
        %v229 = vmul.f32 %v217, %v227
        %p230 = scmp.eq.s32.totalorder %s22, 0
        // Predicated region
        $region29: #{pool_bn.2} parent=23 // pred_check
          %p231 = pneg %p230
        $region30: #{pool_bn.2} parent=23 // pred_check_branch
          %233 = sbr.rel (%p231) target = $region32
        $region31: #{pool_bn.2} parent=23 // pred_region
          %vm234 = vcmask 7168
          %235 = vst.msk [vmem:[%s185] sm:$0xff] %vm234, 0.0
          %236 = vst.msk [vmem:[%s189] sm:$0xff] %vm234, 0.0
        $region32: #{pool_bn.2} parent=23 // pred_fallthru
          _
        %v237 = vld [vmem:[%s185] sm:$0xff]
        %v238 = vadd.f32 %v228, %v229
        %239 = vadd.xlane.f32.xlu0 %v238
        %v240 = vpop.xlane.xlu0 %239
        %v241 = vadd.f32 %v237, %v240
        %vm242 = vcmask 7168
        %243 = vst.msk [vmem:[%s185] sm:$0xff] %vm242, %v241
        %v244 = vld [vmem:[%s189] sm:$0xff]
        %v245 = vmul.f32 %v228, %v228
        %v246 = vmul.f32 %v229, %v229
        %v247 = vadd.f32 %v245, %v246
        %248 = vadd.xlane.f32.xlu0 %v247
        %v249 = vpop.xlane.xlu0 %248
        %v250 = vadd.f32 %v244, %v249
        %251 = vst.msk [vmem:[%s189] sm:$0xff] %vm242, %v250
        %p252 = scmp.lt.s32.totalorder %s21, 1
        %s253 = scalar_select %p252, %s21, 1
        %s254 = smul.addr %s253, 8
        %s255 = scalar_lea.vmem %s1, %s254
        %p256 = scmp.lt.s32.totalorder %s21, 1
        %s257 = scalar_select %p256, %s21, 1
        %s258 = smul.addr %s257, 8
        %s259 = scalar_lea.vmem %s2, %s258
        // Predicated region
        $region33: #{pool_bn.2} parent=23 // pred_check
          %p260 = pneg %p75
        $region34: #{pool_bn.2} parent=23 // pred_check_branch
          %262 = sbr.rel (%p260) target = $region36
        $region35: #{pool_bn.2} parent=23 // pred_region
          _
        $region36: #{pool_bn.2} parent=23 // pred_fallthru
          _
        // Predicated region
        $region37: #{pool_bn.2} parent=23 // pred_check
          %p263 = pneg %p101
        $region38: #{pool_bn.2} parent=23 // pred_check_branch
          %265 = sbr.rel (%p263) target = $region40
        $region39: #{pool_bn.2} parent=23 // pred_region
          _
        $region40: #{pool_bn.2} parent=23 // pred_fallthru
          _
      $region24: #{pool_bn.2} parent=5 // pred_fallthru
        _
      %p266 = scmp.le.s32.totalorder 2, %s12
      // Predicated region
      $region41: #{pool_bn.2} parent=5 // pred_check
        %p267 = pneg %p266
      $region42: #{pool_bn.2} parent=5 // pred_check_branch
        %269 = sbr.rel (%p267) target = $region44
      $region43: #{pool_bn.2} parent=5 // pred_region
        %s270 = ssub.s32 %s12, 2
        // Predicated region
        $region45: #{pool_bn.2} parent=43 // pred_check
          %p271 = pneg %p81
        $region46: #{pool_bn.2} parent=43 // pred_check_branch
          %273 = sbr.rel (%p271) target = $region48
        $region47: #{pool_bn.2} parent=43 // pred_region
          %p274 = scmp.lt.s32.totalorder %s23, 1
          %s275 = scalar_select %p274, %s23, 1
          %s276 = smul.addr %s275, 8
          %s277 = scalar_lea.vmem %s1, %s276
        $region48: #{pool_bn.2} parent=43 // pred_fallthru
          _
        // Predicated region
        $region49: #{pool_bn.2} parent=43 // pred_check
          %p278 = pneg %p107
        $region50: #{pool_bn.2} parent=43 // pred_check_branch
          %280 = sbr.rel (%p278) target = $region52
        $region51: #{pool_bn.2} parent=43 // pred_region
          %p281 = scmp.lt.s32.totalorder %s23, 1
          %s282 = scalar_select %p281, %s23, 1
          %s283 = smul.addr %s282, 8
          %s284 = scalar_lea.vmem %s2, %s283
        $region52: #{pool_bn.2} parent=43 // pred_fallthru
          _
      $region44: #{pool_bn.2} parent=5 // pred_fallthru
        _
    $region6: #{pool_bn.2} parent=1 // loop_footer
      %s16 = sadd.s32 1, %s12
    $region7: #{pool_bn.2} parent=1 // loop_footer_branch
      %11 = sbr.rel target = $region3
    $region8: #{pool_bn.2} parent=1 // loop_exit
      _
    %285 = vsyncpa [#allocation3], 1
    %s286 = scalar_lea.sflag [#allocation3], 1
    %287 = vsyncpa %s286, 1

// kernel: pool_bn.3
$region0: #{pool_bn.3}
  #allocation0 [shape = 'u32[]', space=smem, size = 0x4, offset = 0x4, fixed_abs, tag = 'smem constant byte address 0x4 - core index']
  #allocation1 [shape = 'u32[144,128]{1,0:T(1,128)}', space=vmem, size = 0x12000, scoped, tag = 'internal scratch']
  %s0 = inlined_call_operand.vmem [shape: f32[4,16,128], index: 0, kind: input, shape index: {}]
  %s1 = inlined_call_operand.vmem [shape: f32[1,16,1], index: 1, kind: input, shape index: {}]
  %s2 = inlined_call_operand.vmem [shape: f32[1,16,1], index: 2, kind: input, shape index: {}]
  %s3 = inlined_call_operand.hbm [shape: f32[4,16,128], index: 3, kind: output, shape index: {}]
  %s4 = sld [smem:[#allocation0]]
  $region83: #{pool_bn.3} parent=0
    _
  %s6 = ssub.s32 1, %s4
  %s7 = scalar_select 0, %s6, %s4
  $region1: #{pool_bn.3} parent=0
    #allocation2 [shape = 'u8[16384]{0}', space=vmem, size = 0x4000, scoped, tag = 'input window, operand 0']
    #allocation3 [shape = 'u8[16384]{0}', space=vmem, size = 0x4000, scoped, tag = 'output window, operand 0']
    #allocation4 [shape = 's32[2]{0}', space=sflag, size = 0x8, scoped, tag = 'scoped memory for pool_bn.3']
    %8 = vsyncpa [#allocation4], 0
    %s9 = scalar_lea.sflag [#allocation4], 1
    %10 = vsyncpa %s9, 0
    loop: start=0, step=1, limit=6
    $region2: #{pool_bn.3} parent=1 // loop_pre_header
      _
    $region3: #{pool_bn.3} parent=1 // loop_header
      %s12 = sphi 0, %s16
      %p13 = scmp.ge.s32.totalorder %s12, 6
      %s19 = sphi 0, %s31
      %s20 = sphi 0, %s27
      %s21 = sphi 0, %s19
      %s22 = sphi 0, %s20
      %s23 = sphi 0, %s21
      %s24 = sphi 0, %s22
      %s36 = sphi 0, %s38
      %s39 = sphi 0, %s36
      %s40 = sphi 0, %s39
      %s56 = sphi 0, %s40
      %s62 = sphi 0, %s64
      %s65 = sphi 0, %s62
      %s66 = sphi 0, %s65
      %s82 = sphi 0, %s66
      %s88 = sphi 0, %s90
      %s91 = sphi 0, %s88
      %s92 = sphi 0, %s91
      %s108 = sphi 0, %s92
      %s116 = sphi 0, %s118
      %s119 = sphi 0, %s116
      %s120 = sphi 0, %s119
      %s136 = sphi 0, %s120
    $region4: #{pool_bn.3} parent=1 // loop_header_branch
      %15 = sbr.rel (%p13) target = $region8
    $region5: #{pool_bn.3} parent=1 // loop_body
      %s17 = ssub.s32 %s12, 1
      %s18 = ssub.s32 %s12, 2
      %s25 = sadd.s32 1, %s20
      %p26 = scmp.ge.s32.totalorder %s25, 2
      %s27 = scalar_select %p26, 0, %s25
      %s28 = sadd.s32 1, %s19
      %s29 = scalar_select %p26, %s28, %s19
      %p30 = scmp.ge.s32.totalorder %s29, 2
      %s31 = scalar_select %p30, 0, %s29
      %s32 = ssub.s32 %s20, %s27
      %s33 = ssub.s32 %s19, %s31
      %s34 = sor.u32 %s32, %s33
      %p35 = scmp.eq.s32.totalorder %s34, 0
      %s37 = sadd.s32 %s36, 1
      %s38 = scalar_select %p35, %s36, %s37
      %p41 = pneg %p35
      %p42 = scmp.eq.s32.totalorder %s12, 3
      %p43 = por %p41, %p42
      %p44 = scmp.ne.s32.totalorder %s36, %s39
      %p45 = scmp.eq.s32.totalorder %s12, 0
      %p46 = por %p44, %p45
      %p47 = scmp.ne.s32.totalorder %s36, %s39
      %p48 = scmp.eq.s32.totalorder %s17, 3
      %p49 = por %p47, %p48
      %p50 = scmp.ne.s32.totalorder %s39, %s40
      %p51 = scmp.eq.s32.totalorder %s17, 0
      %p52 = por %p50, %p51
      %p53 = scmp.ne.s32.totalorder %s39, %s40
      %p54 = scmp.eq.s32.totalorder %s18, 3
      %p55 = por %p53, %p54
      %p57 = scmp.ne.s32.totalorder %s40, %s56
      %p58 = scmp.eq.s32.totalorder %s18, 0
      %p59 = por %p57, %p58
      %s60 = ssub.s32 %s19, %s31
      %p61 = scmp.eq.s32.totalorder %s60, 0
      %s63 = sadd.s32 %s62, 1
      %s64 = scalar_select %p61, %s62, %s63
      %p67 = pneg %p61
      %p68 = scmp.eq.s32.totalorder %s12, 3
      %p69 = por %p67, %p68
      %p70 = scmp.ne.s32.totalorder %s62, %s65
      %p71 = scmp.eq.s32.totalorder %s12, 0
      %p72 = por %p70, %p71
      %p73 = scmp.ne.s32.totalorder %s62, %s65
      %p74 = scmp.eq.s32.totalorder %s17, 3
      %p75 = por %p73, %p74
      %p76 = scmp.ne.s32.totalorder %s65, %s66
      %p77 = scmp.eq.s32.totalorder %s17, 0
      %p78 = por %p76, %p77
      %p79 = scmp.ne.s32.totalorder %s65, %s66
      %p80 = scmp.eq.s32.totalorder %s18, 3
      %p81 = por %p79, %p80
      %p83 = scmp.ne.s32.totalorder %s66, %s82
      %p84 = scmp.eq.s32.totalorder %s18, 0
      %p85 = por %p83, %p84
      %s86 = ssub.s32 %s19, %s31
      %p87 = scmp.eq.s32.totalorder %s86, 0
      %s89 = sadd.s32 %s88, 1
      %s90 = scalar_select %p87, %s88, %s89
      %p93 = pneg %p87
      %p94 = scmp.eq.s32.totalorder %s12, 3
      %p95 = por %p93, %p94
      %p96 = scmp.ne.s32.totalorder %s88, %s91
      %p97 = scmp.eq.s32.totalorder %s12, 0
      %p98 = por %p96, %p97
      %p99 = scmp.ne.s32.totalorder %s88, %s91
      %p100 = scmp.eq.s32.totalorder %s17, 3
      %p101 = por %p99, %p100
      %p102 = scmp.ne.s32.totalorder %s91, %s92
      %p103 = scmp.eq.s32.totalorder %s17, 0
      %p104 = por %p102, %p103
      %p105 = scmp.ne.s32.totalorder %s91, %s92
      %p106 = scmp.eq.s32.totalorder %s18, 3
      %p107 = por %p105, %p106
      %p109 = scmp.ne.s32.totalorder %s92, %s108
      %p110 = scmp.eq.s32.totalorder %s18, 0
      %p111 = por %p109, %p110
      %s112 = ssub.s32 %s20, %s27
      %s113 = ssub.s32 %s19, %s31
      %s114 = sor.u32 %s112, %s113
      %p115 = scmp.eq.s32.totalorder %s114, 0
      %s117 = sadd.s32 %s116, 1
      %s118 = scalar_select %p115, %s116, %s117
      %p121 = pneg %p115
      %p122 = scmp.eq.s32.totalorder %s12, 3
      %p123 = por %p121, %p122
      %p124 = scmp.ne.s32.totalorder %s116, %s119
      %p125 = scmp.eq.s32.totalorder %s12, 0
      %p126 = por %p124, %p125
      %p127 = scmp.ne.s32.totalorder %s116, %s119
      %p128 = scmp.eq.s32.totalorder %s17, 3
      %p129 = por %p127, %p128
      %p130 = scmp.ne.s32.totalorder %s119, %s120
      %p131 = scmp.eq.s32.totalorder %s17, 0
      %p132 = por %p130, %p131
      %p133 = scmp.ne.s32.totalorder %s119, %s120
      %p134 = scmp.eq.s32.totalorder %s18, 3
      %p135 = por %p133, %p134
      %p137 = scmp.ne.s32.totalorder %s120, %s136
      %p138 = scmp.eq.s32.totalorder %s18, 0
      %p139 = por %p137, %p138
      %p140 = scmp.le.s32.totalorder 1, %s12
      %p141 = scmp.lt.s32.totalorder %s12, 5
      %p142 = pnand %p140, %p141
      %p143 = pneg %p142
      // Predicated region
      $region9: #{pool_bn.3} parent=5 // pred_check
        _
      $region10: #{pool_bn.3} parent=5 // pred_check_branch
        %145 = sbr.rel (%p142) target = $region12
      $region11: #{pool_bn.3} parent=5 // pred_region
        %s146 = ssub.s32 %s12, 1
      $region12: #{pool_bn.3} parent=5 // pred_fallthru
        _
      %p147 = scmp.lt.s32.totalorder %s12, 4
      // Predicated region
      $region13: #{pool_bn.3} parent=5 // pred_check
        %p148 = pneg %p147
      $region14: #{pool_bn.3} parent=5 // pred_check_branch
        %150 = sbr.rel (%p148) target = $region16
      $region15: #{pool_bn.3} parent=5 // pred_region
        // Predicated region
        $region17: #{pool_bn.3} parent=15 // pred_check
          %p151 = pneg %p46
        $region18: #{pool_bn.3} parent=15 // pred_check_branch
          %153 = sbr.rel (%p151) target = $region20
        $region19: #{pool_bn.3} parent=15 // pred_region
          %s154 = sand.u32 %s36, 1
          %s155 = sand.u32 %s36, 1
          %s156 = smul.addr %s155, 16
          %s157 = scalar_lea.vmem [#allocation2], %s156
          %s158 = smul.u32 2, %s20
          %s159 = smul.addr %s158, 2
          %s160 = sadd.s32 %s19, %s159
          %s161 = smul.addr %s160, 8
          %s162 = scalar_lea.vmem %s0, %s161
          // Predicated region
          $region21: #{pool_bn.3} parent=19 // pred_check
            _
          $region22: #{pool_bn.3} parent=19 // pred_check_branch
            %164 = sbr.rel (0) target = $region24
          $region23: #{pool_bn.3} parent=19 // pred_region
            // Predicated region
            $region25: #{pool_bn.3} parent=23 // pred_check
              _
            $region26: #{pool_bn.3} parent=23 // pred_check_branch
              %166 = sbr.rel (0) target = $region28
            $region27: #{pool_bn.3} parent=23 // pred_region
              // Predicated region
              $region40: #{pool_bn.3} parent=27 // pred_check
                _
              $region41: #{pool_bn.3} parent=27 // pred_check_branch
                %184 = sbr.rel (0) target = $region43
              $region42: #{pool_bn.3} parent=27 // pred_region
                loop: start=0, step=1, limit=1
                $region44: #{pool_bn.3} parent=42 // loop_pre_header
                  _
                $region45: #{pool_bn.3} parent=42 // loop_header
                  %s186 = sphi 0, %s190
                  %p187 = scmp.ge.s32.totalorder %s186, 1
                  %s191 = sphi %s162, %s162
                  %s192 = sphi %s157, %s157
                $region46: #{pool_bn.3} parent=42 // loop_header_branch
                  %189 = sbr.rel (%p187) target = $region50
                $region47: #{pool_bn.3} parent=42 // loop_body
                  %v193 = vld [vmem:[%s191] sm:$0xff]
                  %194 = vst [vmem:[%s192] sm:$0xff] %v193
                  %v195 = vld [vmem:[%s191 + $0x10] sm:$0xff]
                  %196 = vst [vmem:[%s192 + $0x8] sm:$0xff] %v195
                $region48: #{pool_bn.3} parent=42 // loop_footer
                  %s190 = sadd.s32 1, %s186
                $region49: #{pool_bn.3} parent=42 // loop_footer_branch
                  %185 = sbr.rel target = $region45
                $region50: #{pool_bn.3} parent=42 // loop_exit
                  _
              $region43: #{pool_bn.3} parent=27 // pred_fallthru
                _
              // Predicated region
              $region51: #{pool_bn.3} parent=27 // pred_check
                _
              $region52: #{pool_bn.3} parent=27 // pred_check_branch
                %198 = sbr.rel target = $region54
              $region53: #{pool_bn.3} parent=27 // pred_region
                _
              $region54: #{pool_bn.3} parent=27 // pred_fallthru
                _
            $region28: #{pool_bn.3} parent=23 // pred_fallthru
              _
            // Predicated region
            $region29: #{pool_bn.3} parent=23 // pred_check
              _
            $region30: #{pool_bn.3} parent=23 // pred_check_branch
              %168 = sbr.rel target = $region32
            $region31: #{pool_bn.3} parent=23 // pred_region
              %s170 = ssub.s32 256, 1
              loop: start=0, step=1, limit=1
              $region33: #{pool_bn.3} parent=31 // loop_pre_header
                _
              $region34: #{pool_bn.3} parent=31 // loop_header
                %s172 = sphi 0, %s176
                %p173 = scmp.ge.s32.totalorder %s172, 1
                %s177 = sphi %s162, %s162
                %s178 = sphi %s157, %s157
              $region35: #{pool_bn.3} parent=31 // loop_header_branch
                %175 = sbr.rel (%p173) target = $region39
              $region36: #{pool_bn.3} parent=31 // loop_body
                %v179 = vld [vmem:[%s177] sm:%s170]
                %180 = vst [vmem:[%s178] sm:%s170] %v179
                %v181 = vld [vmem:[%s177 + $0x10] sm:%s170]
                %182 = vst [vmem:[%s178 + $0x8] sm:%s170] %v181
              $region37: #{pool_bn.3} parent=31 // loop_footer
                %s176 = sadd.s32 1, %s172
              $region38: #{pool_bn.3} parent=31 // loop_footer_branch
                %171 = sbr.rel target = $region34
              $region39: #{pool_bn.3} parent=31 // loop_exit
                _
            $region32: #{pool_bn.3} parent=23 // pred_fallthru
              _
          $region24: #{pool_bn.3} parent=19 // pred_fallthru
            _
          %199 = vnop
        $region20: #{pool_bn.3} parent=15 // pred_fallthru
          _
        // Predicated region
        $region55: #{pool_bn.3} parent=15 // pred_check
          %p200 = pneg %p72
        $region56: #{pool_bn.3} parent=15 // pred_check_branch
          %202 = sbr.rel (%p200) target = $region58
        $region57: #{pool_bn.3} parent=15 // pred_region
          %p203 = scmp.lt.s32.totalorder %s19, 1
          %s204 = scalar_select %p203, %s19, 1
          %s205 = smul.addr %s204, 8
          %s206 = scalar_lea.vmem %s1, %s205
        $region58: #{pool_bn.3} parent=15 // pred_fallthru
          _
        // Predicated region
        $region59: #{pool_bn.3} parent=15 // pred_check
          %p207 = pneg %p98
        $region60: #{pool_bn.3} parent=15 // pred_check_branch
          %209 = sbr.rel (%p207) target = $region62
        $region61: #{pool_bn.3} parent=15 // pred_region
          %p210 = scmp.lt.s32.totalorder %s19, 1
          %s211 = scalar_select %p210, %s19, 1
          %s212 = smul.addr %s211, 8
          %s213 = scalar_lea.vmem %s2, %s212
        $region62: #{pool_bn.3} parent=15 // pred_fallthru
          _
      $region16: #{pool_bn.3} parent=5 // pred_fallthru
        _
      %p214 = scmp.le.s32.totalorder 1, %s12
      %p215 = scmp.lt.s32.totalorder %s12, 5
      %p216 = pnand %p214, %p215
      %p217 = pneg %p216
      // Predicated region
      $region63: #{pool_bn.3} parent=5 // pred_check
        _
      $region64: #{pool_bn.3} parent=5 // pred_check_branch
        %219 = sbr.rel (%p216) target = $region66
      $region65: #{pool_bn.3} parent=5 // pred_region
        %s220 = ssub.s32 %s12, 1
        %s221 = sand.u32 %s39, 1
        %s222 = sand.u32 %s39, 1
        %s223 = smul.addr %s222, 16
        %s224 = scalar_lea.vmem [#allocation2], %s223
        // Predicated region
        $region67: #{pool_bn.3} parent=65 // pred_check
          %p225 = pneg %p52
        $region68: #{pool_bn.3} parent=65 // pred_check_branch
          %227 = sbr.rel (%p225) target = $region70
        $region69: #{pool_bn.3} parent=65 // pred_region
          _
        $region70: #{pool_bn.3} parent=65 // pred_fallthru
          _
        %s228 = sand.u32 %s39, 1
        %s229 = sand.u32 %s39, 1
        %s230 = smul.addr %s229, 16
        %s231 = scalar_lea.vmem [#allocation2], %s230
        %p232 = pneg %p52
        %p233 = pneg %p49
        %p234 = scmp.lt.s32.totalorder %s21, 1
        %s235 = scalar_select %p234, %s21, 1
        %s236 = smul.addr %s235, 8
        %s237 = scalar_lea.vmem %s1, %s236
        %p238 = pneg %p78
        %p239 = pneg %p75
        %p240 = scmp.lt.s32.totalorder %s21, 1
        %s241 = scalar_select %p240, %s21, 1
        %s242 = smul.addr %s241, 8
        %s243 = scalar_lea.vmem %s2, %s242
        %p244 = pneg %p104
        %p245 = pneg %p101
        %p246 = pneg %p132
        %p247 = pneg %p129
        %s248 = sand.u32 %s119, 1
        %s249 = scalar_lea.sflag [#allocation4], %s248
        %s250 = sand.u32 %s119, 1
        %s251 = smul.addr %s250, 16
        %s252 = scalar_lea.vmem [#allocation3], %s251
        %s253 = smul.u32 2, %s22
        %p254 = scmp.lt.s32.totalorder %s21, 1
        %s255 = scalar_select %p254, %s21, 1
        %s256 = smul.addr %s255, 8
        %s257 = scalar_lea.vmem %s1, %s256
        %p258 = scmp.lt.s32.totalorder %s21, 1
        %s259 = scalar_select %p258, %s21, 1
        %s260 = smul.addr %s259, 8
        %s261 = scalar_lea.vmem %s2, %s260
        %s262 = smul.u32 2, %s22
        %v263 = vld [vmem:[%s224] sm:$0xff]
        %v264 = vld [vmem:[%s224 + $0x8] sm:$0xff]
        %265 = vrot.lane.b32.xlu0 %v263, 1
        %v266 = vpop.permute.xlu0 %265
        %267 = vrot.lane.b32.xlu0 %v264, 1
        %v268 = vpop.permute.xlu0 %267
        %v269 = vlaneseq
        %v270 = vand.u32 %v269, 127
        %v271 = vadd.s32 %v270, 4294967295
        %vm272 = vcmp.ge.s32.totalorder %v271, 0
        %v273 = vsel %vm272, 1, 0
        %vm274 = vcmp.eq.s32.totalorder %v273, 1
        %v275 = vsel %vm274, %v266, 0.0
        %v276 = vsel %vm274, %v268, 0.0
        %v277 = vadd.f32 %v275, %v263
        %v278 = vadd.f32 %v276, %v264
        %279 = vrot.lane.b32.xlu0 %v263, 127
        %v280 = vpop.permute.xlu0 %279
        %281 = vrot.lane.b32.xlu0 %v264, 127
        %v282 = vpop.permute.xlu0 %281
        %v283 = vadd.s32 %v270, 1
        %vm284 = vcmp.lt.s32.totalorder %v283, 128
        %v285 = vsel %vm284, 1, 0
        %vm286 = vcmp.eq.s32.totalorder %v285, 1
        %v287 = vsel %vm286, %v280, 0.0
        %v288 = vsel %vm286, %v282, 0.0
        %v289 = vadd.f32 %v277, %v287
        %v290 = vadd.f32 %v278, %v288
        %v291 = vsub.s32 %v270, 1
        %v292 = vadd.s32 %v291, 3
        %vm293 = vcmp.lt.s32.totalorder %v292, 128
        %v294 = vsel %vm293, %v292, 128
        %vm295 = vcmp.gt.s32.totalorder %v291, 0
        %v296 = vsel %vm295, %v291, 0
        %v297 = vsub.s32 %v294, %v296
        %v298 = vcvt.s32.f32 %v297
        %v299 = vrcp.pop %v298
        %v300 = vmul.f32 1.0, %v299
        %v301 = vmul.f32 %v289, %v300
        %v302 = vmul.f32 %v290, %v300
        %v303 = vld [vmem:[%s257] sm:$0xff]
        %305 = vset.pattern.permute.xlu0 0
        %306 = vperm.xlu0 %305, %v303
        %v307 = vpop.permute.xlu0 %306
        %v309 = vmul.f32 %v301, %v307
        %v310 = vmul.f32 %v302, %v307
        %v311 = vld [vmem:[%s261] sm:$0xff]
        %313 = vset.pattern.permute.xlu0 0
        %314 = vperm.xlu0 %313, %v311
        %v315 = vpop.permute.xlu0 %314
        %v317 = vadd.f32 %v309, %v315
        %v318 = vadd.f32 %v310, %v315
        %319 = vst [vmem:[%s252] sm:$0xff] %v317
        %320 = vst [vmem:[%s252 + $0x8] sm:$0xff] %v318
        %s321 = sand.u32 %s119, 1
        %s322 = scalar_lea.sflag [#allocation4], %s321
        %s323 = sand.u32 %s119, 1
        %s324 = smul.addr %s323, 16
        %s325 = scalar_lea.vmem [#allocation3], %s324
        // Predicated region
        $region71: #{pool_bn.3} parent=65 // pred_check
          %p326 = pneg %p129
        $region72: #{pool_bn.3} parent=65 // pred_check_branch
          %328 = sbr.rel (%p326) target = $region74
        $region73: #{pool_bn.3} parent=65 // pred_region
          %s329 = smul.u32 2, %s22
          %s331 = ssub.s32 256, 256
          %332 = vsyncadd %s322, %s331
          %s333 = smul.addr %s329, 2
          %s334 = sadd.s32 %s21, %s333
          %s335 = smul.addr %s334, 128
          %s336 = scalar_lea.hbm %s3, %s335
          %s337 = sshll.u32 %s325, 4
          %s338 = int_to_ptr.vmem [resolvable:$true] %s337
          %343 = dma.vmem_to_hbm [thread:$0]  %s338, 256, %s336, %s322, 128, 256, 8
        $region74: #{pool_bn.3} parent=65 // pred_fallthru
          _
      $region66: #{pool_bn.3} parent=5 // pred_fallthru
        _
      %p344 = scmp.le.s32.totalorder 2, %s12
      // Predicated region
      $region75: #{pool_bn.3} parent=5 // pred_check
        %p345 = pneg %p344
      $region76: #{pool_bn.3} parent=5 // pred_check_branch
        %347 = sbr.rel (%p345) target = $region78
      $region77: #{pool_bn.3} parent=5 // pred_region
        %s348 = ssub.s32 %s12, 2
        // Predicated region
        $region79: #{pool_bn.3} parent=77 // pred_check
          %p349 = pneg %p135
        $region80: #{pool_bn.3} parent=77 // pred_check_branch
          %351 = sbr.rel (%p349) target = $region82
        $region81: #{pool_bn.3} parent=77 // pred_region
          %s352 = sand.u32 %s120, 1
          %s353 = scalar_lea.sflag [#allocation4], %s352
          %s354 = sand.u32 %s120, 1
          %s355 = smul.addr %s354, 16
          %s356 = scalar_lea.vmem [#allocation3], %s355
          %357 = dma.done %s353, 256
        $region82: #{pool_bn.3} parent=77 // pred_fallthru
          _
      $region78: #{pool_bn.3} parent=5 // pred_fallthru
        _
    $region6: #{pool_bn.3} parent=1 // loop_footer
      %s16 = sadd.s32 1, %s12
    $region7: #{pool_bn.3} parent=1 // loop_footer_branch
      %11 = sbr.rel target = $region3
    $region8: #{pool_bn.3} parent=1 // loop_exit
      _
    %358 = vsyncpa [#allocation4], 1
    %s359 = scalar_lea.sflag [#allocation4], 1
    %360 = vsyncpa %s359, 1

</llo_original>
